<compile_context>
chip_gen: v5e
topology: v5e:2x2
jax: 0.10.0
libtpu: 0.0.40
codegen_flags: <defaults>
</compile_context>

<pallas_src>
import functools

import numpy as np
import jax
import jax.numpy as jnp
from jax import lax
from jax.experimental import pallas as pl
from jax.experimental.pallas import tpu as pltpu

BN_EPS = 1e-5
_LANES = 128
_MAX_LANE_CHUNKS = 64          # caps the unrolled per-tile VPU add chain


# ----------------------- hardware queries (defensive) ------------------------

def _vmem_capacity_bytes(default=64 << 20):
    """Physical VMEM per core; falls back to the v7x value (most conservative)."""
    try:
        info = pltpu.get_tpu_info()
        v = getattr(info, "vmem_capacity_bytes", None)
        if v:
            return int(v)
    except Exception:
        pass
    return default


def _detect_num_tensorcores(default=1):
    """TensorCores per chip (2 on v7x / megacore chips); defaults to 1."""
    try:
        info = pltpu.get_tpu_info()
        for name in ("num_cores", "num_tensorcores", "num_tensor_cores",
                     "tensorcore_count", "core_count"):
            v = getattr(info, name, None)
            if v:
                return max(1, int(v))
    except Exception:
        pass
    return default


def _pick_tile_cols(hw, bytes_per_col, vmem_cap, max_chunks=_MAX_LANE_CHUNKS):
    """Spatial tile width (lane dim). Multiple of 128 (or full extent if tiny)."""
    if hw < _LANES:
        return hw                                  # tiny spatial extent
    # ~12 MiB/buffer on 128-MiB-VMEM chips (v5e/v6e), ~8 MiB on 64-MiB (v7x);
    # the BlockSpec double-buffers, so 2x this lands in scoped VMEM.
    target = (12 << 20) if vmem_cap >= (96 << 20) else (8 << 20)
    cap_chunks = max(1, min(target // max(bytes_per_col, 1) // _LANES, max_chunks))
    cap = cap_chunks * _LANES
    if hw % _LANES == 0 and hw <= cap:
        return hw
    if hw % _LANES == 0:
        # Prefer an exact divisor near the budget (avoids tail masking).
        for d in range(cap, cap // 2 - 1, -_LANES):
            if d >= _LANES and hw % d == 0:
                return d
    return min(cap, (hw // _LANES) * _LANES)       # cdiv grid + in-kernel mask


# ------------------------------ kernel helpers --------------------------------

def _accumulate_tile(acc_ref, x_ref, tile_idx, hw, tile_s, use_mask):
    """Add one (B, C, tile_s) tile into the lane-preserving (B, C, 128) acc.

    Steady-state work is vld + VALU only: static 128-lane slices are added
    lane-for-lane; the single cross-lane (XLU) reduce is deferred to the
    epilogue.  bf16 inputs get one pairwise add in bf16 before the f32 upcast.
    """
    xv = x_ref[...]                                            # (B, C, tile_s)
    if use_mask:
        col = tile_idx * tile_s + lax.broadcasted_iota(
            jnp.int32, xv.shape, xv.ndim - 1)
        xv = jnp.where(col < hw, xv, jnp.zeros((), xv.dtype))
    if tile_s % _LANES == 0:
        n = tile_s // _LANES
        parts = [xv[:, :, i * _LANES:(i + 1) * _LANES] for i in range(n)]
        if xv.dtype == jnp.bfloat16 and n >= 2 and n % 2 == 0:
            # One pairwise add in bf16 halves the f32 VPU work (v6e/v7x bf16 VALU).
            parts = [(parts[2 * i] + parts[2 * i + 1]).astype(jnp.float32)
                     for i in range(n // 2)]
        else:
            parts = [q.astype(jnp.float32) for q in parts]
        while len(parts) > 1:                                  # short tree reduce
            nxt = [parts[i] + parts[i + 1] for i in range(0, len(parts) - 1, 2)]
            if len(parts) % 2:
                nxt.append(parts[-1])
            parts = nxt
        acc_ref[...] += parts[0]
    else:
        # Tiny spatial extent (< 128 columns): single cross-lane reduce, lane 0.
        acc_ref[:, :, 0:1] += jnp.sum(xv.astype(jnp.float32), axis=-1,
                                      keepdims=True)


def _attn_epilogue(pooled, wr_ref, bias_ref, ws_ref, o_ref):
    """pooled (B, C) f32 mean -> fc_reduce(+folded BN) -> ReLU -> fc_select -> path softmax."""
    C = pooled.shape[-1]
    P = ws_ref.shape[1] // C
    h = jnp.dot(pooled, wr_ref[...],
                preferred_element_type=jnp.float32) + bias_ref[...]
    h = jnp.maximum(h, 0.0)
    logits = jnp.dot(h, ws_ref[...], preferred_element_type=jnp.float32)  # (B, P*C)
    parts = [logits[:, i * C:(i + 1) * C] for i in range(P)]
    m = parts[0]
    for q in parts[1:]:
        m = jnp.maximum(m, q)
    exps = [jnp.exp(q - m) for q in parts]
    denom = exps[0]
    for e in exps[1:]:
        denom = denom + e
    inv = pl.reciprocal(denom, approx=True)        # EUP slot; ~1e-3 rel. error
    o_ref[...] = jnp.concatenate([e * inv for e in exps],
                                 axis=-1).astype(o_ref.dtype)


# --------------------------------- kernels ------------------------------------

def _sk_fused_kernel(hw, tile_s, use_mask,
                     x_ref, wr_ref, bias_ref, ws_ref, o_ref, acc_ref):
    """Fused path. grid = (num_paths, spatial_tiles); both axes are reductions."""
    p = pl.program_id(0)
    s = pl.program_id(1)

    @pl.when(jnp.logical_and(p == 0, s == 0))
    def _init():
        acc_ref[...] = jnp.zeros_like(acc_ref)

    _accumulate_tile(acc_ref, x_ref, s, hw, tile_s, use_mask)

    @pl.when(jnp.logical_and(p == pl.num_programs(0) - 1,
                             s == pl.num_programs(1) - 1))
    def _epilogue():
        pooled = jnp.sum(acc_ref[...], axis=-1) * (1.0 / hw)   # one XLU reduce
        _attn_epilogue(pooled, wr_ref, bias_ref, ws_ref, o_ref)


def _sk_pool_kernel(hw, tile_s, tiles_per_split, use_mask,
                    x_ref, psum_ref, acc_ref):
    """Split path. grid = (n_split, num_paths, tiles_per_split); axis 0 parallel."""
    n = pl.program_id(0)
    p = pl.program_id(1)
    s = pl.program_id(2)

    @pl.when(jnp.logical_and(p == 0, s == 0))
    def _init():
        acc_ref[...] = jnp.zeros_like(acc_ref)

    # Unclamped global tile index: duplicated / out-of-range tiles mask to zero.
    _accumulate_tile(acc_ref, x_ref, n * tiles_per_split + s, hw, tile_s, use_mask)

    @pl.when(jnp.logical_and(p == pl.num_programs(1) - 1,
                             s == pl.num_programs(2) - 1))
    def _finish():
        psum_ref[...] = jnp.sum(acc_ref[...], axis=-1)         # (B, C) partial sum


def _sk_select_kernel(inv_hw, psum_ref, wr_ref, bias_ref, ws_ref, o_ref):
    """Micro kernel: combine per-split partial sums + fc_reduce/BN/ReLU/fc_select/softmax."""
    pooled = jnp.sum(psum_ref[...], axis=0) * inv_hw           # (B, C) mean
    _attn_epilogue(pooled, wr_ref, bias_ref, ws_ref, o_ref)


# --------------------------------- wrapper -------------------------------------

def selective_kernel_attn(x, params, *, spatial_tile=None, n_split=None,
                          cast_to_bf16=False):
    """x: (B, num_paths, channels, H, W) -> (B, num_paths, channels, 1, 1) f32."""
    B, P, C, H, W = x.shape
    A = params["w_reduce"].shape[0]
    HW = H * W

    if cast_to_bf16 and x.dtype == jnp.float32:
        # Optional: halves the dominant HBM read of this bandwidth-bound kernel;
        # in-kernel accumulation stays f32 (mild numerics impact).
        x = x.astype(jnp.bfloat16)

    xk = x.reshape(B, P, C, HW)              # copy-free layout change only

    # Fold eval-mode BatchNorm into fc_reduce.
    # TODO(synk): training-mode BN (batch statistics) is not implemented.
    scale = params["bn_gamma"] / jnp.sqrt(params["bn_var"] + BN_EPS)            # (A,)
    wr = params["w_reduce"][:, :, 0, 0].T.astype(jnp.float32) * scale[None, :]  # (C, A)
    bias = (params["bn_beta"] - params["bn_mean"] * scale
            ).reshape(1, A).astype(jnp.float32)                                 # (1, A)
    ws = params["w_select"][:, :, 0, 0].T.astype(jnp.float32)                   # (A, P*C)

    itemsize = jnp.dtype(x.dtype).itemsize
    vmem_cap = _vmem_capacity_bytes()

    if spatial_tile is None:
        tile_s = _pick_tile_cols(HW, B * C * itemsize, vmem_cap)
    else:
        tile_s = int(spatial_tile)
        assert tile_s == HW or (tile_s % _LANES == 0 and tile_s <= HW), (HW, tile_s)
    s_total = pl.cdiv(HW, tile_s)
    col_mask = (s_total * tile_s) != HW      # tail tile needs in-kernel masking

    if n_split is None:
        n_split = _detect_num_tensorcores()
    n_split = max(1, min(int(n_split), s_total))

    vmem_limit = int(min((vmem_cap * 3) // 4, 96 << 20))

    cost = pl.CostEstimate(
        flops=int(B * P * C * HW + 2 * B * (C * A + A * P * C)),
        transcendentals=int(B * P * C),
        bytes_accessed=int(xk.size * itemsize
                           + (wr.size + bias.size + ws.size) * 4 + B * P * C * 4),
    )

    x_block = (B, None, C, tile_s)           # path dim squeezed out of the ref

    if n_split <= 1:
        # Fused single pass (best on single-TensorCore chips: v5e/v6e).
        kernel = functools.partial(_sk_fused_kernel, HW, tile_s, col_mask)
        out = pl.pallas_call(
            kernel,
            out_shape=jax.ShapeDtypeStruct((B, P * C), jnp.float32),
            grid=(P, s_total),
            in_specs=[
                pl.BlockSpec(x_block, lambda p, s: (0, p, 0, s)),
                pl.BlockSpec((C, A), lambda p, s: (0, 0)),
                pl.BlockSpec((1, A), lambda p, s: (0, 0)),
                pl.BlockSpec((A, P * C), lambda p, s: (0, 0)),
            ],
            out_specs=pl.BlockSpec((B, P * C), lambda p, s: (0, 0)),
            scratch_shapes=[pltpu.VMEM((B, C, _LANES), jnp.float32)],
            compiler_params=pltpu.CompilerParams(
                dimension_semantics=("arbitrary", "arbitrary"),
                vmem_limit_bytes=vmem_limit),
            cost_estimate=cost,
        )(xk, wr, bias, ws)
    else:
        # Split streaming across TensorCores (v7x / megacore): leading "parallel"
        # axis shards the spatial tiles; each split writes its own partial pooled
        # sum; a tiny second pallas_call fuses combine + epilogue.
        spt = pl.cdiv(s_total, n_split)
        clamp = (spt * n_split) != s_total   # duplicated tail tiles masked to zero
        use_mask = col_mask or clamp

        def x_map(n, p, s):
            t = n * spt + s
            if clamp:
                t = jnp.minimum(t, s_total - 1)
            return (0, p, 0, t)

        pool = functools.partial(_sk_pool_kernel, HW, tile_s, spt, use_mask)
        psum = pl.pallas_call(
            pool,
            out_shape=jax.ShapeDtypeStruct((n_split, B, C), jnp.float32),
            grid=(n_split, P, spt),
            in_specs=[pl.BlockSpec(x_block, x_map)],
            out_specs=pl.BlockSpec((None, B, C), lambda n, p, s: (n, 0, 0)),
            scratch_shapes=[pltpu.VMEM((B, C, _LANES), jnp.float32)],
            compiler_params=pltpu.CompilerParams(
                dimension_semantics=("parallel", "arbitrary", "arbitrary"),
                vmem_limit_bytes=vmem_limit),
            cost_estimate=cost,
        )(xk)
        out = pl.pallas_call(
            functools.partial(_sk_select_kernel, 1.0 / HW),
            out_shape=jax.ShapeDtypeStruct((B, P * C), jnp.float32),
        )(psum, wr, bias, ws)

    # (B, P*C) -> (B, P, C, 1, 1); copy-free reshape in the glue.
    return out.reshape(B, P, C)[:, :, :, None, None]


# -------------------------- reference & parameters -----------------------------

def selective_kernel_attn_ref(x, params):
    """Pure-JAX reference (mirrors the PyTorch forward, eval-mode BN)."""
    B, P, C, H, W = x.shape
    pooled = x.astype(jnp.float32).sum(1).mean((2, 3))              # (B, C)
    h = pooled @ params["w_reduce"][:, :, 0, 0].T                   # (B, A)
    h = (h - params["bn_mean"]) / jnp.sqrt(params["bn_var"] + BN_EPS)
    h = h * params["bn_gamma"] + params["bn_beta"]
    h = jnp.maximum(h, 0.0)
    s = h @ params["w_select"][:, :, 0, 0].T                        # (B, P*C)
    s = s.reshape(B, P, C)
    s = jax.nn.softmax(s, axis=1)
    return s[:, :, :, None, None]


def make_params(key, channels, num_paths, attn_channels):
    ks = jax.random.split(key, 6)
    w_reduce = jax.random.normal(ks[0], (attn_channels, channels, 1, 1),
                                 jnp.float32) * np.sqrt(2.0 / channels)
    w_select = jax.random.normal(ks[1], (channels * num_paths, attn_channels, 1, 1),
                                 jnp.float32) * np.sqrt(2.0 / attn_channels)
    bn_gamma = 1.0 + 0.1 * jax.random.normal(ks[2], (attn_channels,), jnp.float32)
    bn_beta = 0.1 * jax.random.normal(ks[3], (attn_channels,), jnp.float32)
    bn_mean = 0.1 * jax.random.normal(ks[4], (attn_channels,), jnp.float32)
    bn_var = 1.0 + 0.5 * jax.random.uniform(ks[5], (attn_channels,), jnp.float32)
    return dict(w_reduce=w_reduce, w_select=w_select, bn_gamma=bn_gamma,
                bn_beta=bn_beta, bn_mean=bn_mean, bn_var=bn_var)


if __name__ == "__main__":
    key = jax.random.PRNGKey(0)

    # Test 1: module-consistent small shapes; single spatial tile, fused path.
    B, P, C, H, W, A = 2, 2, 4, 16, 16, 32
    kx, kp, key = jax.random.split(key, 3)
    x = jax.random.normal(kx, (B, P, C, H, W), jnp.float32)
    params = make_params(kp, C, P, A)
    out = jax.block_until_ready(selective_kernel_attn(x, params))
    ref = selective_kernel_attn_ref(x, params)
    assert out.shape == (B, P, C, 1, 1), out.shape
    np.testing.assert_allclose(np.asarray(out), np.asarray(ref),
                               rtol=2e-2, atol=2e-3)

    # Test 2: fused path with a multi-step (paths x spatial) grid and a masked
    # tail tile (H*W = 320 is not a multiple of the 128-column tile).
    B2, P2, C2, H2, W2, A2 = 2, 3, 8, 16, 20, 32
    kx2, kp2, key = jax.random.split(key, 3)
    x2 = jax.random.normal(kx2, (B2, P2, C2, H2, W2), jnp.float32)
    params2 = make_params(kp2, C2, P2, A2)
    out2 = jax.block_until_ready(
        selective_kernel_attn(x2, params2, spatial_tile=128, n_split=1))
    ref2 = selective_kernel_attn_ref(x2, params2)
    np.testing.assert_allclose(np.asarray(out2), np.asarray(ref2),
                               rtol=2e-2, atol=2e-3)

    # Test 3: split (multi-TensorCore) path on the same input: 2 splits over 3
    # spatial tiles exercises tile clamping + masking + the combine kernel.
    out3 = jax.block_until_ready(
        selective_kernel_attn(x2, params2, spatial_tile=128, n_split=2))
    np.testing.assert_allclose(np.asarray(out3), np.asarray(ref2),
                               rtol=2e-2, atol=2e-3)

    # Test 4: bf16 streaming path (wrapper cast + in-kernel pairwise bf16 adds).
    B4, P4, C4, H4, W4, A4 = 2, 2, 8, 32, 32, 32
    kx4, kp4 = jax.random.split(key)
    x4 = jax.random.normal(kx4, (B4, P4, C4, H4, W4), jnp.float32)
    params4 = make_params(kp4, C4, P4, A4)
    out4 = jax.block_until_ready(
        selective_kernel_attn(x4, params4, spatial_tile=256, n_split=1,
                              cast_to_bf16=True))
    ref4 = selective_kernel_attn_ref(x4, params4)
    np.testing.assert_allclose(np.asarray(out4), np.asarray(ref4),
                               rtol=5e-2, atol=5e-3)

    print("KERNEL_OK")
</pallas_src>

<mosaic_0001>
module attributes {stable_mosaic.version = 11 : i64} {
  func.func @_sk_fused_kernel(%arg0: i32, %arg1: i32, %arg2: memref<2x1x4x256xf32, #tpu.memory_space<vmem>>, %arg3: memref<4x32xf32, #tpu.memory_space<vmem>>, %arg4: memref<1x32xf32, #tpu.memory_space<vmem>>, %arg5: memref<32x8xf32, #tpu.memory_space<vmem>>, %arg6: memref<2x8xf32, #tpu.memory_space<vmem>>, %arg7: memref<2x4x128xf32, #tpu.memory_space<vmem>>) attributes {dimension_semantics = [#tpu.dimension_semantics<arbitrary>, #tpu.dimension_semantics<arbitrary>], iteration_bounds = array<i64: 2, 1>, scalar_prefetch = 0 : i64, scratch_operands = 1 : i64, tpu.core_type = #tpu.core_type<tc>, window_params = [{transform_indices = @transform_0, window_bounds = array<i64: 2, 1, 4, 256>}, {pipeline_mode = #tpu.pipeline_mode<synchronous>, transform_indices = @transform_1, window_bounds = array<i64: 4, 32>}, {pipeline_mode = #tpu.pipeline_mode<synchronous>, transform_indices = @transform_2, window_bounds = array<i64: 1, 32>}, {pipeline_mode = #tpu.pipeline_mode<synchronous>, transform_indices = @transform_3, window_bounds = array<i64: 32, 8>}, {pipeline_mode = #tpu.pipeline_mode<synchronous>, transform_indices = @transform_4, window_bounds = array<i64: 2, 8>}]} {
    %c0_i32 = arith.constant 0 : i32
    %0 = arith.cmpi eq, %arg0, %c0_i32 : i32
    %c0_i32_0 = arith.constant 0 : i32
    %1 = arith.cmpi eq, %arg1, %c0_i32_0 : i32
    %2 = arith.andi %0, %1 : i1
    %3 = arith.extui %2 : i1 to i32
    %c0_i32_1 = arith.constant 0 : i32
    %4 = arith.cmpi ne, %3, %c0_i32_1 : i32
    scf.if %4 {
      %cst = arith.constant 0.000000e+00 : f32
      %18 = vector.broadcast %cst : f32 to vector<2x4x128xf32>
      %c0_13 = arith.constant 0 : index
      %c0_14 = arith.constant 0 : index
      %c0_15 = arith.constant 0 : index
      %19 = vector.load %arg7[%c0_13, %c0_14, %c0_15] : memref<2x4x128xf32, #tpu.memory_space<vmem>>, vector<2x4x128xf32>
      tpu.vector_store %arg7[%c0_13, %c0_14, %c0_15], %18 {strides = array<i32>} : memref<2x4x128xf32, #tpu.memory_space<vmem>>, vector<2x4x128xf32>,
    } else {
    }
    %c0 = arith.constant 0 : index
    %c0_2 = arith.constant 0 : index
    %c0_3 = arith.constant 0 : index
    %c0_4 = arith.constant 0 : index
    %5 = vector.load %arg2[%c0, %c0_2, %c0_3, %c0_4] : memref<2x1x4x256xf32, #tpu.memory_space<vmem>>, vector<2x1x4x256xf32>
    %6 = vector.shape_cast %5 : vector<2x1x4x256xf32> to vector<2x4x256xf32>
    %7 = vector.extract_strided_slice %6 {offsets = [0, 0, 0], sizes = [2, 4, 128], strides = [1, 1, 1]} : vector<2x4x256xf32> to vector<2x4x128xf32>
    %8 = vector.extract_strided_slice %6 {offsets = [0, 0, 128], sizes = [2, 4, 128], strides = [1, 1, 1]} : vector<2x4x256xf32> to vector<2x4x128xf32>
    %9 = arith.addf %7, %8 : vector<2x4x128xf32>
    %c0_5 = arith.constant 0 : index
    %c0_6 = arith.constant 0 : index
    %c0_7 = arith.constant 0 : index
    %10 = vector.load %arg7[%c0_5, %c0_6, %c0_7] : memref<2x4x128xf32, #tpu.memory_space<vmem>>, vector<2x4x128xf32>
    %11 = arith.addf %10, %9 : vector<2x4x128xf32>
    %c0_8 = arith.constant 0 : index
    %c0_9 = arith.constant 0 : index
    %c0_10 = arith.constant 0 : index
    %12 = vector.load %arg7[%c0_8, %c0_9, %c0_10] : memref<2x4x128xf32, #tpu.memory_space<vmem>>, vector<2x4x128xf32>
    tpu.vector_store %arg7[%c0_8, %c0_9, %c0_10], %11 {strides = array<i32>} : memref<2x4x128xf32, #tpu.memory_space<vmem>>, vector<2x4x128xf32>,
    %c1_i32 = arith.constant 1 : i32
    %13 = arith.cmpi eq, %arg0, %c1_i32 : i32
    %c0_i32_11 = arith.constant 0 : i32
    %14 = arith.cmpi eq, %arg1, %c0_i32_11 : i32
    %15 = arith.andi %13, %14 : i1
    %16 = arith.extui %15 : i1 to i32
    %c0_i32_12 = arith.constant 0 : i32
    %17 = arith.cmpi ne, %16, %c0_i32_12 : i32
    scf.if %17 {
      %c0_13 = arith.constant 0 : index
      %c0_14 = arith.constant 0 : index
      %c0_15 = arith.constant 0 : index
      %18 = vector.load %arg7[%c0_13, %c0_14, %c0_15] : memref<2x4x128xf32, #tpu.memory_space<vmem>>, vector<2x4x128xf32>
      %cst = arith.constant dense<0.000000e+00> : vector<2x4xf32>
      %19 = vector.multi_reduction <add>, %18, %cst [2] : vector<2x4x128xf32> to vector<2x4xf32>
      %cst_16 = arith.constant 3.906250e-03 : f32
      %20 = vector.broadcast %cst_16 : f32 to vector<2x4xf32>
      %21 = arith.mulf %19, %20 : vector<2x4xf32>
      %c0_17 = arith.constant 0 : index
      %c0_18 = arith.constant 0 : index
      %22 = vector.load %arg3[%c0_17, %c0_18] : memref<4x32xf32, #tpu.memory_space<vmem>>, vector<4x32xf32>
      %cst_19 = arith.constant dense<0.000000e+00> : vector<2x32xf32>
      %23 = tpu.matmul %21, %22, %cst_19 {dimension_numbers = #tpu.dot_dimension_numbers<[1], [0], [0], [1], [0, 0, 1, 1], [], []>} : vector<2x4xf32>, vector<4x32xf32>, vector<2x32xf32> -> vector<2x32xf32>
      %c0_20 = arith.constant 0 : index
      %c0_21 = arith.constant 0 : index
      %24 = vector.load %arg4[%c0_20, %c0_21] : memref<1x32xf32, #tpu.memory_space<vmem>>, vector<1x32xf32>
      %25 = vector.broadcast %24 : vector<1x32xf32> to vector<2x32xf32>
      %26 = arith.addf %23, %25 : vector<2x32xf32>
      %cst_22 = arith.constant 0.000000e+00 : f32
      %27 = vector.broadcast %cst_22 : f32 to vector<2x32xf32>
      %28 = arith.maximumf %26, %27 : vector<2x32xf32>
      %c0_23 = arith.constant 0 : index
      %c0_24 = arith.constant 0 : index
      %29 = vector.load %arg5[%c0_23, %c0_24] : memref<32x8xf32, #tpu.memory_space<vmem>>, vector<32x8xf32>
      %cst_25 = arith.constant dense<0.000000e+00> : vector<2x8xf32>
      %30 = tpu.matmul %28, %29, %cst_25 {dimension_numbers = #tpu.dot_dimension_numbers<[1], [0], [0], [1], [0, 0, 1, 1], [], []>} : vector<2x32xf32>, vector<32x8xf32>, vector<2x8xf32> -> vector<2x8xf32>
      %31 = vector.extract_strided_slice %30 {offsets = [0, 0], sizes = [2, 4], strides = [1, 1]} : vector<2x8xf32> to vector<2x4xf32>
      %32 = vector.extract_strided_slice %30 {offsets = [0, 4], sizes = [2, 4], strides = [1, 1]} : vector<2x8xf32> to vector<2x4xf32>
      %33 = arith.maximumf %31, %32 : vector<2x4xf32>
      %34 = arith.subf %31, %33 : vector<2x4xf32>
      %35 = math.exp %34 : vector<2x4xf32>
      %36 = arith.subf %32, %33 : vector<2x4xf32>
      %37 = math.exp %36 : vector<2x4xf32>
      %38 = arith.addf %35, %37 : vector<2x4xf32>
      %39 = tpu.reciprocal %38 {approx = true} : vector<2x4xf32> -> vector<2x4xf32>
      %40 = arith.mulf %35, %39 : vector<2x4xf32>
      %41 = arith.mulf %37, %39 : vector<2x4xf32>
      %42 = tpu.concatenate %40, %41 in 1 : vector<2x4xf32>, vector<2x4xf32> -> vector<2x8xf32>
      %c0_26 = arith.constant 0 : index
      %c0_27 = arith.constant 0 : index
      %43 = vector.load %arg6[%c0_26, %c0_27] : memref<2x8xf32, #tpu.memory_space<vmem>>, vector<2x8xf32>
      tpu.vector_store %arg6[%c0_26, %c0_27], %42 {strides = array<i32>} : memref<2x8xf32, #tpu.memory_space<vmem>>, vector<2x8xf32>,
    } else {
    }
    return
  }
  func.func @transform_0(%arg0: i32, %arg1: i32) -> (i32, i32, i32, i32) {
    %c0_i32 = arith.constant 0 : i32
    %c0_i32_0 = arith.constant 0 : i32
    %c0_i32_1 = arith.constant 0 : i32
    return %c0_i32, %arg0, %c0_i32_0, %arg1 : i32, i32, i32, i32
  }
  func.func @transform_1(%arg0: i32, %arg1: i32) -> (i32, i32) {
    %c0_i32 = arith.constant 0 : i32
    %c0_i32_0 = arith.constant 0 : i32
    %c0_i32_1 = arith.constant 0 : i32
    return %c0_i32, %c0_i32_0 : i32, i32
  }
  func.func @transform_2(%arg0: i32, %arg1: i32) -> (i32, i32) {
    %c0_i32 = arith.constant 0 : i32
    %c0_i32_0 = arith.constant 0 : i32
    %c0_i32_1 = arith.constant 0 : i32
    return %c0_i32, %c0_i32_0 : i32, i32
  }
  func.func @transform_3(%arg0: i32, %arg1: i32) -> (i32, i32) {
    %c0_i32 = arith.constant 0 : i32
    %c0_i32_0 = arith.constant 0 : i32
    %c0_i32_1 = arith.constant 0 : i32
    return %c0_i32, %c0_i32_0 : i32, i32
  }
  func.func @transform_4(%arg0: i32, %arg1: i32) -> (i32, i32) {
    %c0_i32 = arith.constant 0 : i32
    %c0_i32_0 = arith.constant 0 : i32
    %c0_i32_1 = arith.constant 0 : i32
    return %c0_i32, %c0_i32_0 : i32, i32
  }
}

</mosaic_0001>

<llo_original>
// kernel: tpu_custom_call.1
$region0: #{tpu_custom_call.1}
  #allocation0 [shape = 'u32[]', space=smem, size = 0x4, offset = 0x4, fixed_abs, tag = 'smem constant byte address 0x4 - core index']
  #allocation1 [shape = 'u32[72,128]{1,0:T(1,128)}', space=vmem, size = 0x9000, scoped, tag = 'internal scratch']
  #allocation2 [shape = 'f32[2,4,128]{2,1,0:T(4,128)}', space=vmem, size = 0x1000, scoped, tag = 'scratch operand']
  %s0 = inlined_call_operand.vmem [shape: f32[2,2,4,256], index: 0, kind: input, shape index: {}]
  %s1 = inlined_call_operand.vmem [shape: f32[4,32], index: 1, kind: input, shape index: {}]
  %s2 = inlined_call_operand.vmem [shape: f32[1,32], index: 2, kind: input, shape index: {}]
  %s3 = inlined_call_operand.vmem [shape: f32[32,8], index: 3, kind: input, shape index: {}]
  %s4 = inlined_call_operand.hbm [shape: f32[2,8], index: 4, kind: output, shape index: {}]
  %s5 = sld [smem:[#allocation0]]
  $region95: #{tpu_custom_call.1} parent=0
    _
  %s7 = ssub.s32 1, %s5
  %s8 = scalar_select 0, %s7, %s5
  $region1: #{tpu_custom_call.1} parent=0
    #allocation3 [shape = 'u8[16384]{0}', space=vmem, size = 0x4000, scoped, tag = 'input window, operand 0']
    #allocation4 [shape = 'u8[1024]{0}', space=vmem, size = 0x400, scoped, tag = 'output window, operand 0, single buffered']
    #allocation5 [shape = 's32[2]{0}', space=sflag, size = 0x8, scoped, tag = 'scoped memory for tpu_custom_call.1']
    %9 = vsyncpa [#allocation5], 0
    loop: start=0, step=1, limit=4
    $region2: #{tpu_custom_call.1} parent=1 // loop_pre_header
      _
    $region3: #{tpu_custom_call.1} parent=1 // loop_header
      %s11 = sphi 0, %s15
      %p12 = scmp.ge.s32.totalorder %s11, 4
      %s18 = sphi 0, %s30
      %s19 = sphi 0, %s26
      %s20 = sphi 0, %s18
      %s21 = sphi 0, %s19
      %s22 = sphi 0, %s20
      %s23 = sphi 0, %s21
      %s35 = sphi 0, %s37
      %s38 = sphi 0, %s35
      %s39 = sphi 0, %s38
      %s55 = sphi 0, %s39
      %s59 = sphi 0, %s59
      %s61 = sphi 0, %s59
      %s62 = sphi 0, %s61
      %s76 = sphi 0, %s62
      %s80 = sphi 0, %s80
      %s82 = sphi 0, %s80
      %s83 = sphi 0, %s82
      %s97 = sphi 0, %s83
      %s101 = sphi 0, %s101
      %s103 = sphi 0, %s101
      %s104 = sphi 0, %s103
      %s118 = sphi 0, %s104
      %s122 = sphi 0, %s122
      %s124 = sphi 0, %s122
      %s125 = sphi 0, %s124
      %s139 = sphi 0, %s125
    $region4: #{tpu_custom_call.1} parent=1 // loop_header_branch
      %14 = sbr.rel (%p12) target = $region8
    $region5: #{tpu_custom_call.1} parent=1 // loop_body
      %s16 = ssub.s32 %s11, 1
      %s17 = ssub.s32 %s11, 2
      %s24 = sadd.s32 1, %s19
      %p25 = scmp.ge.s32.totalorder %s24, 1
      %s26 = scalar_select %p25, 0, %s24
      %s27 = sadd.s32 1, %s18
      %s28 = scalar_select %p25, %s27, %s18
      %p29 = scmp.ge.s32.totalorder %s28, 2
      %s30 = scalar_select %p29, 0, %s28
      %s31 = ssub.s32 %s18, %s30
      %s32 = ssub.s32 %s19, %s26
      %s33 = sor.u32 %s31, %s32
      %p34 = scmp.eq.s32.totalorder %s33, 0
      %s36 = sadd.s32 %s35, 1
      %s37 = scalar_select %p34, %s35, %s36
      %p40 = pneg %p34
      %p41 = scmp.eq.s32.totalorder %s11, 1
      %p42 = por %p40, %p41
      %p43 = scmp.ne.s32.totalorder %s35, %s38
      %p44 = scmp.eq.s32.totalorder %s11, 0
      %p45 = por %p43, %p44
      %p46 = scmp.ne.s32.totalorder %s35, %s38
      %p47 = scmp.eq.s32.totalorder %s16, 1
      %p48 = por %p46, %p47
      %p49 = scmp.ne.s32.totalorder %s38, %s39
      %p50 = scmp.eq.s32.totalorder %s16, 0
      %p51 = por %p49, %p50
      %p52 = scmp.ne.s32.totalorder %s38, %s39
      %p53 = scmp.eq.s32.totalorder %s17, 1
      %p54 = por %p52, %p53
      %p56 = scmp.ne.s32.totalorder %s39, %s55
      %p57 = scmp.eq.s32.totalorder %s17, 0
      %p58 = por %p56, %p57
      %s60 = sadd.s32 %s59, 1
      %p63 = scmp.eq.s32.totalorder %s11, 1
      %p64 = scmp.ne.s32.totalorder %s59, %s61
      %p65 = scmp.eq.s32.totalorder %s11, 0
      %p66 = por %p64, %p65
      %p67 = scmp.ne.s32.totalorder %s59, %s61
      %p68 = scmp.eq.s32.totalorder %s16, 1
      %p69 = por %p67, %p68
      %p70 = scmp.ne.s32.totalorder %s61, %s62
      %p71 = scmp.eq.s32.totalorder %s16, 0
      %p72 = por %p70, %p71
      %p73 = scmp.ne.s32.totalorder %s61, %s62
      %p74 = scmp.eq.s32.totalorder %s17, 1
      %p75 = por %p73, %p74
      %p77 = scmp.ne.s32.totalorder %s62, %s76
      %p78 = scmp.eq.s32.totalorder %s17, 0
      %p79 = por %p77, %p78
      %s81 = sadd.s32 %s80, 1
      %p84 = scmp.eq.s32.totalorder %s11, 1
      %p85 = scmp.ne.s32.totalorder %s80, %s82
      %p86 = scmp.eq.s32.totalorder %s11, 0
      %p87 = por %p85, %p86
      %p88 = scmp.ne.s32.totalorder %s80, %s82
      %p89 = scmp.eq.s32.totalorder %s16, 1
      %p90 = por %p88, %p89
      %p91 = scmp.ne.s32.totalorder %s82, %s83
      %p92 = scmp.eq.s32.totalorder %s16, 0
      %p93 = por %p91, %p92
      %p94 = scmp.ne.s32.totalorder %s82, %s83
      %p95 = scmp.eq.s32.totalorder %s17, 1
      %p96 = por %p94, %p95
      %p98 = scmp.ne.s32.totalorder %s83, %s97
      %p99 = scmp.eq.s32.totalorder %s17, 0
      %p100 = por %p98, %p99
      %s102 = sadd.s32 %s101, 1
      %p105 = scmp.eq.s32.totalorder %s11, 1
      %p106 = scmp.ne.s32.totalorder %s101, %s103
      %p107 = scmp.eq.s32.totalorder %s11, 0
      %p108 = por %p106, %p107
      %p109 = scmp.ne.s32.totalorder %s101, %s103
      %p110 = scmp.eq.s32.totalorder %s16, 1
      %p111 = por %p109, %p110
      %p112 = scmp.ne.s32.totalorder %s103, %s104
      %p113 = scmp.eq.s32.totalorder %s16, 0
      %p114 = por %p112, %p113
      %p115 = scmp.ne.s32.totalorder %s103, %s104
      %p116 = scmp.eq.s32.totalorder %s17, 1
      %p117 = por %p115, %p116
      %p119 = scmp.ne.s32.totalorder %s104, %s118
      %p120 = scmp.eq.s32.totalorder %s17, 0
      %p121 = por %p119, %p120
      %s123 = sadd.s32 %s122, 1
      %p126 = scmp.eq.s32.totalorder %s11, 1
      %p127 = scmp.ne.s32.totalorder %s122, %s124
      %p128 = scmp.eq.s32.totalorder %s11, 0
      %p129 = por %p127, %p128
      %p130 = scmp.ne.s32.totalorder %s122, %s124
      %p131 = scmp.eq.s32.totalorder %s16, 1
      %p132 = por %p130, %p131
      %p133 = scmp.ne.s32.totalorder %s124, %s125
      %p134 = scmp.eq.s32.totalorder %s16, 0
      %p135 = por %p133, %p134
      %p136 = scmp.ne.s32.totalorder %s124, %s125
      %p137 = scmp.eq.s32.totalorder %s17, 1
      %p138 = por %p136, %p137
      %p140 = scmp.ne.s32.totalorder %s125, %s139
      %p141 = scmp.eq.s32.totalorder %s17, 0
      %p142 = por %p140, %p141
      %p143 = scmp.le.s32.totalorder 1, %s11
      %p144 = scmp.lt.s32.totalorder %s11, 3
      %p145 = pnand %p143, %p144
      %p146 = pneg %p145
      // Predicated region
      $region9: #{tpu_custom_call.1} parent=5 // pred_check
        _
      $region10: #{tpu_custom_call.1} parent=5 // pred_check_branch
        %148 = sbr.rel (%p145) target = $region12
      $region11: #{tpu_custom_call.1} parent=5 // pred_region
        %s149 = ssub.s32 %s11, 1
        // Predicated region
        $region13: #{tpu_custom_call.1} parent=11 // pred_check
          %p150 = pneg %p72
        $region14: #{tpu_custom_call.1} parent=11 // pred_check_branch
          %152 = sbr.rel (%p150) target = $region16
        $region15: #{tpu_custom_call.1} parent=11 // pred_region
          _
        $region16: #{tpu_custom_call.1} parent=11 // pred_fallthru
          _
        // Predicated region
        $region17: #{tpu_custom_call.1} parent=11 // pred_check
          %p153 = pneg %p93
        $region18: #{tpu_custom_call.1} parent=11 // pred_check_branch
          %155 = sbr.rel (%p153) target = $region20
        $region19: #{tpu_custom_call.1} parent=11 // pred_region
          _
        $region20: #{tpu_custom_call.1} parent=11 // pred_fallthru
          _
        // Predicated region
        $region21: #{tpu_custom_call.1} parent=11 // pred_check
          %p156 = pneg %p114
        $region22: #{tpu_custom_call.1} parent=11 // pred_check_branch
          %158 = sbr.rel (%p156) target = $region24
        $region23: #{tpu_custom_call.1} parent=11 // pred_region
          _
        $region24: #{tpu_custom_call.1} parent=11 // pred_fallthru
          _
      $region12: #{tpu_custom_call.1} parent=5 // pred_fallthru
        _
      %p159 = scmp.lt.s32.totalorder %s11, 2
      // Predicated region
      $region25: #{tpu_custom_call.1} parent=5 // pred_check
        %p160 = pneg %p159
      $region26: #{tpu_custom_call.1} parent=5 // pred_check_branch
        %162 = sbr.rel (%p160) target = $region28
      $region27: #{tpu_custom_call.1} parent=5 // pred_region
        // Predicated region
        $region29: #{tpu_custom_call.1} parent=27 // pred_check
          %p163 = pneg %p45
        $region30: #{tpu_custom_call.1} parent=27 // pred_check_branch
          %165 = sbr.rel (%p163) target = $region32
        $region31: #{tpu_custom_call.1} parent=27 // pred_region
          %s166 = sand.u32 %s35, 1
          %s167 = sand.u32 %s35, 1
          %s168 = smul.addr %s167, 16
          %s169 = scalar_lea.vmem [#allocation3], %s168
          %s170 = smul.u32 2, %s19
          %s171 = smul.addr %s18, 2
          %s172 = sadd.s32 %s170, %s171
          %s173 = smul.addr %s172, 4
          %s174 = scalar_lea.vmem %s0, %s173
          // Predicated region
          $region33: #{tpu_custom_call.1} parent=31 // pred_check
            _
          $region34: #{tpu_custom_call.1} parent=31 // pred_check_branch
            %176 = sbr.rel (0) target = $region36
          $region35: #{tpu_custom_call.1} parent=31 // pred_region
            // Predicated region
            $region37: #{tpu_custom_call.1} parent=35 // pred_check
              _
            $region38: #{tpu_custom_call.1} parent=35 // pred_check_branch
              %178 = sbr.rel (0) target = $region40
            $region39: #{tpu_custom_call.1} parent=35 // pred_region
              // Predicated region
              $region52: #{tpu_custom_call.1} parent=39 // pred_check
                _
              $region53: #{tpu_custom_call.1} parent=39 // pred_check_branch
                %196 = sbr.rel (0) target = $region55
              $region54: #{tpu_custom_call.1} parent=39 // pred_region
                loop: start=0, step=1, limit=1
                $region56: #{tpu_custom_call.1} parent=54 // loop_pre_header
                  _
                $region57: #{tpu_custom_call.1} parent=54 // loop_header
                  %s198 = sphi 0, %s202
                  %p199 = scmp.ge.s32.totalorder %s198, 1
                  %s203 = sphi %s174, %s174
                  %s204 = sphi %s169, %s169
                $region58: #{tpu_custom_call.1} parent=54 // loop_header_branch
                  %201 = sbr.rel (%p199) target = $region62
                $region59: #{tpu_custom_call.1} parent=54 // loop_body
                  %v205 = vld [vmem:[%s203] sm:$0xff]
                  %206 = vst [vmem:[%s204] sm:$0xff] %v205
                  %v207 = vld [vmem:[%s203 + $0x10] sm:$0xff]
                  %208 = vst [vmem:[%s204 + $0x8] sm:$0xff] %v207
                $region60: #{tpu_custom_call.1} parent=54 // loop_footer
                  %s202 = sadd.s32 1, %s198
                $region61: #{tpu_custom_call.1} parent=54 // loop_footer_branch
                  %197 = sbr.rel target = $region57
                $region62: #{tpu_custom_call.1} parent=54 // loop_exit
                  _
              $region55: #{tpu_custom_call.1} parent=39 // pred_fallthru
                _
              // Predicated region
              $region63: #{tpu_custom_call.1} parent=39 // pred_check
                _
              $region64: #{tpu_custom_call.1} parent=39 // pred_check_branch
                %210 = sbr.rel target = $region66
              $region65: #{tpu_custom_call.1} parent=39 // pred_region
                _
              $region66: #{tpu_custom_call.1} parent=39 // pred_fallthru
                _
            $region40: #{tpu_custom_call.1} parent=35 // pred_fallthru
              _
            // Predicated region
            $region41: #{tpu_custom_call.1} parent=35 // pred_check
              _
            $region42: #{tpu_custom_call.1} parent=35 // pred_check_branch
              %180 = sbr.rel target = $region44
            $region43: #{tpu_custom_call.1} parent=35 // pred_region
              %s182 = ssub.s32 256, 1
              loop: start=0, step=1, limit=1
              $region45: #{tpu_custom_call.1} parent=43 // loop_pre_header
                _
              $region46: #{tpu_custom_call.1} parent=43 // loop_header
                %s184 = sphi 0, %s188
                %p185 = scmp.ge.s32.totalorder %s184, 1
                %s189 = sphi %s174, %s174
                %s190 = sphi %s169, %s169
              $region47: #{tpu_custom_call.1} parent=43 // loop_header_branch
                %187 = sbr.rel (%p185) target = $region51
              $region48: #{tpu_custom_call.1} parent=43 // loop_body
                %v191 = vld [vmem:[%s189] sm:%s182]
                %192 = vst [vmem:[%s190] sm:%s182] %v191
                %v193 = vld [vmem:[%s189 + $0x10] sm:%s182]
                %194 = vst [vmem:[%s190 + $0x8] sm:%s182] %v193
              $region49: #{tpu_custom_call.1} parent=43 // loop_footer
                %s188 = sadd.s32 1, %s184
              $region50: #{tpu_custom_call.1} parent=43 // loop_footer_branch
                %183 = sbr.rel target = $region46
              $region51: #{tpu_custom_call.1} parent=43 // loop_exit
                _
            $region44: #{tpu_custom_call.1} parent=35 // pred_fallthru
              _
          $region36: #{tpu_custom_call.1} parent=31 // pred_fallthru
            _
          %211 = vnop
        $region32: #{tpu_custom_call.1} parent=27 // pred_fallthru
          _
      $region28: #{tpu_custom_call.1} parent=5 // pred_fallthru
        _
      %p212 = scmp.le.s32.totalorder 1, %s11
      %p213 = scmp.lt.s32.totalorder %s11, 3
      %p214 = pnand %p212, %p213
      %p215 = pneg %p214
      // Predicated region
      $region67: #{tpu_custom_call.1} parent=5 // pred_check
        _
      $region68: #{tpu_custom_call.1} parent=5 // pred_check_branch
        %217 = sbr.rel (%p214) target = $region70
      $region69: #{tpu_custom_call.1} parent=5 // pred_region
        %s218 = ssub.s32 %s11, 1
        %s219 = sand.u32 %s38, 1
        %s220 = sand.u32 %s38, 1
        %s221 = smul.addr %s220, 16
        %s222 = scalar_lea.vmem [#allocation3], %s221
        // Predicated region
        $region71: #{tpu_custom_call.1} parent=69 // pred_check
          %p223 = pneg %p51
        $region72: #{tpu_custom_call.1} parent=69 // pred_check_branch
          %225 = sbr.rel (%p223) target = $region74
        $region73: #{tpu_custom_call.1} parent=69 // pred_region
          _
        $region74: #{tpu_custom_call.1} parent=69 // pred_fallthru
          _
        %s226 = sand.u32 %s38, 1
        %s227 = sand.u32 %s38, 1
        %s228 = smul.addr %s227, 16
        %s229 = scalar_lea.vmem [#allocation3], %s228
        %p230 = pneg %p51
        %p231 = pneg %p48
        %p232 = pneg %p72
        %p233 = pneg %p69
        %p234 = pneg %p93
        %p235 = pneg %p90
        %p236 = pneg %p114
        %p237 = pneg %p111
        %p238 = pneg %p135
        %p239 = pneg %p132
        %s240 = smul.u32 2, %s21
        %p241 = scmp.eq.s32.totalorder %s20, 0
        %p242 = scmp.eq.s32.totalorder %s21, 0
        %p243 = pnand %p241, %p242
        %p244 = pneg %p243
        // Predicated region
        $region75: #{tpu_custom_call.1} parent=69 // pred_check
          _
        $region76: #{tpu_custom_call.1} parent=69 // pred_check_branch
          %246 = sbr.rel (%p243) target = $region78
        $region77: #{tpu_custom_call.1} parent=69 // pred_region
          %247 = vst [vmem:[#allocation2] sm:$0xf] 0.0
          %248 = vst [vmem:[#allocation2 + $0x4] sm:$0xf] 0.0
        $region78: #{tpu_custom_call.1} parent=69 // pred_fallthru
          _
        %v249 = vld [vmem:[%s222] sm:$0xff]
        %v250 = vld [vmem:[%s222 + $0x8] sm:$0xff]
        %v253 = vrot.slane %v249, 4
        %v254 = vrot.slane %v250, 4
        %v257 = vadd.f32 %v249, %v253
        %v258 = vadd.f32 %v250, %v254
        %v259 = vld [vmem:[#allocation2] sm:$0xf]
        %v260 = vld [vmem:[#allocation2 + $0x4] sm:$0xf]
        %v261 = vadd.f32 %v259, %v257
        %v262 = vadd.f32 %v260, %v258
        %263 = vst [vmem:[#allocation2] sm:$0xf] %v261
        %264 = vst [vmem:[#allocation2 + $0x4] sm:$0xf] %v262
        %p265 = scmp.eq.s32.totalorder %s20, 1
        %p266 = pnand %p265, %p242
        %p267 = pneg %p266
        // Predicated region
        $region79: #{tpu_custom_call.1} parent=69 // pred_check
          _
        $region80: #{tpu_custom_call.1} parent=69 // pred_check_branch
          %269 = sbr.rel (%p266) target = $region82
        $region81: #{tpu_custom_call.1} parent=69 // pred_region
          %v270 = vld [vmem:[#allocation2] sm:$0xf]
          %v271 = vld [vmem:[#allocation2 + $0x4] sm:$0xf]
          %vm272 = vcmask 1043456
          %v273 = vsel %vm272, %v270, 0.0
          %274 = vadd.xlane.f32.xlu0 %v273
          %v275 = vpop.xlane.xlu0 %274
          %v276 = vsel %vm272, %v271, 0.0
          %277 = vadd.xlane.f32.xlu0 %v276
          %v278 = vpop.xlane.xlu0 %277
          %v279 = vmul.f32 %v275, 0.00390625
          %v280 = vmul.f32 %v278, 0.00390625
          %v281 = vld [vmem:[%s1] sm:$0xf]
          %v282 = vld [vmem:[%s2] sm:$0x1]
          %v284 = vperm.slane %v282, 0
          %v288 = vlaneseq
          %v289 = vand.u32 %v288, 127
          %v290 = vperm.slane %v279, %v289
          %v291 = vperm.slane %v280, %v289
          %vm292 = vcmask 1041409
          %v293 = vsel %vm292, %v291, %v290
          %vm294 = vcmask 31744
          %v295 = vsel %vm294, %v293, 0
          %v298 = vsel %vm272, %v281, 0
          %300 = vmatpush.msra.mxu0 0.0
          %301 = vmatpush.msra.mxu0 0.0
          %302 = vmatpush.msra.mxu0 0.0
          %303 = vmatpush.msra.mxu0 0.0
          %304 = vmatpush.msra.mxu0 0.0
          %305 = vmatpush.msra.mxu0 0.0
          %306 = vmatpush.msra.mxu0 0.0
          %307 = vmatpush.msra.mxu0 0.0
          %308 = vmatpush.msra.mxu0 0.0
          %309 = vmatpush.msra.mxu0 0.0
          %310 = vmatpush.msra.mxu0 0.0
          %311 = vmatpush.msra.mxu0 0.0
          %312 = vmatpush.msra.mxu0 0.0
          %313 = vmatpush.msra.mxu0 0.0
          %314 = vmatpush.msra.mxu0 0.0
          %315 = vmatpush.msra.mxu0 %v298
          %316 = vmatmul.f32.gmra.mxu0 %v295
          %v317 = vpop.f32.mrf.mxu0
          %v318 = vadd.f32 %v284, %v317
          %319 = vdwg.mxu0
          %v320 = vmax.f32 %v318, 0.0
          %v321 = vld [vmem:[%s3] sm:$0xff]
          %v322 = vld [vmem:[%s3 + $0x8] sm:$0xff]
          %v323 = vld [vmem:[%s3 + $0x10] sm:$0xff]
          %v324 = vld [vmem:[%s3 + $0x18] sm:$0xff]
          %vm325 = vcmask 261120
          %v327 = vsel %vm325, %v320, 0
          %329 = vmatpush.msra.mxu0 0.0
          %330 = vmatpush.msra.mxu0 0.0
          %331 = vmatpush.msra.mxu0 0.0
          %332 = vmatpush.msra.mxu0 0.0
          %333 = vmatpush.msra.mxu0 0.0
          %334 = vmatpush.msra.mxu0 0.0
          %335 = vmatpush.msra.mxu0 0.0
          %336 = vmatpush.msra.mxu0 0.0
          %337 = vmatpush.msra.mxu0 0.0
          %338 = vmatpush.msra.mxu0 0.0
          %339 = vmatpush.msra.mxu0 0.0
          %340 = vmatpush.msra.mxu0 0.0
          %341 = vmatpush.msra.mxu0 %v324
          %342 = vmatpush.msra.mxu0 %v323
          %343 = vmatpush.msra.mxu0 %v322
          %344 = vmatpush.msra.mxu0 %v321
          %345 = vmatmul.f32.gmra.mxu0 %v327
          %v346 = vpop.f32.mrf.mxu0
          %v347 = vadd.f32 0.0, %v346
          %348 = vdwg.mxu0
          %350 = vrot.lane.b32.xlu0 %v347, 124
          %v351 = vpop.permute.xlu0 %350
          %v353 = vmax.f32 %v347, %v351
          %v354 = vsub.f32 %v347, %v353
          %v355 = vmul.f32 %v354, 1.442695
          %v356 = vpow.pop %v355
          %358 = vrot.lane.b32.xlu0 %v353, 4
          %v359 = vpop.permute.xlu0 %358
          %v361 = vsub.f32 %v347, %v359
          %v362 = vmul.f32 %v361, 1.442695
          %v363 = vpow.pop %v362
          %365 = vrot.lane.b32.xlu0 %v363, 124
          %v366 = vpop.permute.xlu0 %365
          %v368 = vadd.f32 %v356, %v366
          %v369 = vrcp.pop %v368
          %v370 = vmul.f32 %v356, %v369
          %372 = vrot.lane.b32.xlu0 %v369, 4
          %v373 = vpop.permute.xlu0 %372
          %v375 = vmul.f32 %v363, %v373
          %v376 = vsel %vm294, %v370, %v375
          %vm377 = vcmask 58368
          %378 = vst.msk [vmem:[#allocation4] sm:$0x3] %vm377, %v376
        $region82: #{tpu_custom_call.1} parent=69 // pred_fallthru
          _
        // Predicated region
        $region83: #{tpu_custom_call.1} parent=69 // pred_check
          %p379 = pneg %p132
        $region84: #{tpu_custom_call.1} parent=69 // pred_check_branch
          %381 = sbr.rel (%p379) target = $region86
        $region85: #{tpu_custom_call.1} parent=69 // pred_region
          %383 = vsyncadd [#allocation5], 0
          %s385 = sshll.u32 [#allocation4], 4
          %s386 = int_to_ptr.vmem [resolvable:$true] %s385
          %s387 = sshll.u32 %s4, 4
          %s388 = int_to_ptr.hbm [resolvable:$true] %s387
          %390 = dma.vmem_to_hbm [thread:$0]  %s386, 32, %s388, [#allocation5]
        $region86: #{tpu_custom_call.1} parent=69 // pred_fallthru
          _
        // Predicated region
        $region87: #{tpu_custom_call.1} parent=69 // pred_check
          %p391 = pneg %p132
        $region88: #{tpu_custom_call.1} parent=69 // pred_check_branch
          %393 = sbr.rel (%p391) target = $region90
        $region89: #{tpu_custom_call.1} parent=69 // pred_region
          %395 = dma.done [#allocation5], 32
        $region90: #{tpu_custom_call.1} parent=69 // pred_fallthru
          _
      $region70: #{tpu_custom_call.1} parent=5 // pred_fallthru
        _
      %p396 = scmp.le.s32.totalorder 2, %s11
      // Predicated region
      $region91: #{tpu_custom_call.1} parent=5 // pred_check
        %p397 = pneg %p396
      $region92: #{tpu_custom_call.1} parent=5 // pred_check_branch
        %399 = sbr.rel (%p397) target = $region94
      $region93: #{tpu_custom_call.1} parent=5 // pred_region
        %s400 = ssub.s32 %s11, 2
      $region94: #{tpu_custom_call.1} parent=5 // pred_fallthru
        _
    $region6: #{tpu_custom_call.1} parent=1 // loop_footer
      %s15 = sadd.s32 1, %s11
    $region7: #{tpu_custom_call.1} parent=1 // loop_footer_branch
      %10 = sbr.rel target = $region3
    $region8: #{tpu_custom_call.1} parent=1 // loop_exit
      _
    %401 = vsyncpa [#allocation5], 1
    %s402 = scalar_lea.sflag [#allocation5], 1
    %403 = vsyncpa %s402, 1

</llo_original>
